<compile_context>
chip_gen: v6e
topology: v6e:2x2x1
jax: 0.10.0
libtpu: 0.0.40
codegen_flags: <defaults>
</compile_context>

<pallas_src>
import jax
import jax.numpy as jnp
from jax.experimental import pallas as pl
from jax.experimental.pallas import tpu as pltpu

# --- module hyperparameters (small, consistent with the module's forward) ---
BATCH = 2
N_CHANNELS = 3
PATCH = 4
IMG = 16                                            # image is IMG x IMG
LATENT = 128                                        # lane-aligned latent size
NUM_PATCHES = (IMG // PATCH) * (IMG // PATCH)       # 16
INPUT_SIZE = PATCH * PATCH * N_CHANNELS             # 48
SEQ = NUM_PATCHES + 1                               # 17 (with class token)


def _round_up(x, m):
    return ((x + m - 1) // m) * m


def extract_patches(x, p):
    """einops: 'b c (h h1) (w w1) -> b (h w) (h1 w1 c)'  (glue, plain JAX)."""
    b, c, H, W = x.shape
    h, w = H // p, W // p
    x = x.reshape(b, c, h, p, w, p)
    x = x.transpose(0, 2, 4, 3, 5, 1)               # b, h, w, h1, w1, c
    return x.reshape(b, h * w, p * p * c)


def input_embedding_kernel(x_ref, w_ref, add_ref, out_ref):
    # x_ref:   (TM, P)  patch rows (class-token / pad rows are zero)
    # w_ref:   (P, L)   weight in native (K, N) MXU layout — fully resident
    # add_ref: (TM, L)  precomputed class_token / bias / pos additive tensor
    # out_ref: (TM, L)
    proj = jnp.dot(x_ref[...], w_ref[...], preferred_element_type=jnp.float32)
    out_ref[...] = (proj + add_ref[...]).astype(out_ref.dtype)


def input_embedding(x, weight, bias, class_token, pos_embedding,
                    patch_size=PATCH, tile_m=128, mxu_dtype=jnp.float32):
    """x: (B, C, H, W) NCHW float32. Returns (B, N+1, LATENT) float32.

    weight: (LATENT, INPUT_SIZE) — native PyTorch nn.Linear layout.
    Set mxu_dtype=jnp.bfloat16 for the v6e/v7x MXU fast path at real shapes.
    """
    b, c, H, W = x.shape
    n = (H // patch_size) * (W // patch_size)
    p_dim = patch_size * patch_size * c
    latent = weight.shape[0]
    seq = n + 1
    rows = b * seq

    # ---- wrapper-side prep (cheap XLA glue) --------------------------------
    # Patches with a zero row per sequence at the class-token slot.
    patches = extract_patches(x, patch_size)                      # (B, N, P)
    patches_seq = jnp.pad(patches, ((0, 0), (1, 0), (0, 0)))      # (B, SEQ, P)
    x_mat = patches_seq.reshape(rows, p_dim)

    # Single additive tensor: row 0 <- class_token + pos, rows 1..N <- bias + pos.
    add_t = pos_embedding + jnp.concatenate(
        [class_token,
         jnp.broadcast_to(bias.reshape(1, 1, latent), (b, n, latent))], axis=1)
    add_mat = add_t.reshape(rows, latent).astype(jnp.float32)     # (B*SEQ, L)

    # Weight pre-transposed to (K, N) = (P, L); no in-kernel rhs transpose.
    w_t = weight.T.astype(mxu_dtype)                              # (P, L)
    x_mat = x_mat.astype(mxu_dtype)

    # Row tiling: TM multiple of 8; pad total rows to a TM multiple.
    tm = min(tile_m, _round_up(rows, 8))
    rows_p = _round_up(rows, tm)
    pad = rows_p - rows
    if pad:
        x_mat = jnp.pad(x_mat, ((0, pad), (0, 0)))
        add_mat = jnp.pad(add_mat, ((0, pad), (0, 0)))

    itemsize = jnp.dtype(mxu_dtype).itemsize
    cost = pl.CostEstimate(
        flops=2 * rows_p * p_dim * latent,
        transcendentals=0,
        bytes_accessed=int(rows_p * p_dim * itemsize        # patches in
                           + p_dim * latent * itemsize      # weight in
                           + rows_p * latent * 4             # add in
                           + rows_p * latent * 4))           # out

    out_mat = pl.pallas_call(
        input_embedding_kernel,
        out_shape=jax.ShapeDtypeStruct((rows_p, latent), jnp.float32),
        grid=(rows_p // tm,),
        in_specs=[
            pl.BlockSpec((tm, p_dim), lambda i: (i, 0),
                         memory_space=pltpu.MemorySpace.VMEM),
            pl.BlockSpec((p_dim, latent), lambda i: (0, 0),      # resident weight
                         memory_space=pltpu.MemorySpace.VMEM),
            pl.BlockSpec((tm, latent), lambda i: (i, 0),
                         memory_space=pltpu.MemorySpace.VMEM),
        ],
        out_specs=pl.BlockSpec((tm, latent), lambda i: (i, 0),
                               memory_space=pltpu.MemorySpace.VMEM),
        input_output_aliases={2: 0},                              # add_mat -> out
        cost_estimate=cost,
        compiler_params=pltpu.CompilerParams(
            dimension_semantics=("parallel",)),
    )(x_mat, w_t, add_mat)

    return out_mat[:rows].reshape(b, seq, latent)


def reference(x, weight, bias, class_token, pos_embedding, patch_size=PATCH):
    patches = extract_patches(x, patch_size)
    proj = jnp.einsum("bnp,lp->bnl", patches, weight) + bias
    full = jnp.concatenate([class_token, proj], axis=1)
    return full + pos_embedding


if __name__ == "__main__":
    key = jax.random.PRNGKey(0)
    k_x, k_w, k_b, k_cls, k_pos = jax.random.split(key, 5)

    # deterministic synthetic parameters (shapes per the module's __init__)
    x = jax.random.normal(k_x, (BATCH, N_CHANNELS, IMG, IMG), jnp.float32)
    weight = jax.random.normal(k_w, (LATENT, INPUT_SIZE), jnp.float32) * 0.02
    bias = jax.random.normal(k_b, (LATENT,), jnp.float32) * 0.02
    class_token = jax.random.normal(k_cls, (BATCH, 1, LATENT), jnp.float32)
    # NOTE: the PyTorch forward re-samples pos_embedding every call; it is kept
    # here as a deterministic synthetic parameter of the same shape.
    pos_embedding = jax.random.normal(k_pos, (BATCH, SEQ, LATENT), jnp.float32)

    out = jax.block_until_ready(
        jax.jit(input_embedding)(x, weight, bias, class_token, pos_embedding))

    ref = reference(x, weight, bias, class_token, pos_embedding)
    assert out.shape == (BATCH, SEQ, LATENT), out.shape
    assert jnp.allclose(out, ref, atol=1e-3, rtol=1e-3), "mismatch vs reference"
    print("KERNEL_OK")
</pallas_src>

<mosaic_0001>
module attributes {stable_mosaic.version = 11 : i64} {
  func.func @input_embedding_kernel(%arg0: i32, %arg1: memref<40x48xf32, #tpu.memory_space<vmem>>, %arg2: memref<48x128xf32, #tpu.memory_space<vmem>>, %arg3: memref<40x128xf32, #tpu.memory_space<vmem>>, %arg4: memref<40x128xf32, #tpu.memory_space<vmem>>) attributes {dimension_semantics = [#tpu.dimension_semantics<parallel>], iteration_bounds = array<i64: 1>, scalar_prefetch = 0 : i64, scratch_operands = 0 : i64, tpu.core_type = #tpu.core_type<tc>, window_params = [{transform_indices = @transform_0, window_bounds = array<i64: 40, 48>}, {pipeline_mode = #tpu.pipeline_mode<synchronous>, transform_indices = @transform_1, window_bounds = array<i64: 48, 128>}, {transform_indices = @transform_2, window_bounds = array<i64: 40, 128>}, {transform_indices = @transform_3, window_bounds = array<i64: 40, 128>}]} {
    %c0 = arith.constant 0 : index
    %c0_0 = arith.constant 0 : index
    %0 = vector.load %arg1[%c0, %c0_0] : memref<40x48xf32, #tpu.memory_space<vmem>>, vector<40x48xf32>
    %c0_1 = arith.constant 0 : index
    %c0_2 = arith.constant 0 : index
    %1 = vector.load %arg2[%c0_1, %c0_2] : memref<48x128xf32, #tpu.memory_space<vmem>>, vector<48x128xf32>
    %cst = arith.constant dense<0.000000e+00> : vector<40x128xf32>
    %2 = tpu.matmul %0, %1, %cst {dimension_numbers = #tpu.dot_dimension_numbers<[1], [0], [0], [1], [0, 0, 1, 1], [], []>} : vector<40x48xf32>, vector<48x128xf32>, vector<40x128xf32> -> vector<40x128xf32>
    %c0_3 = arith.constant 0 : index
    %c0_4 = arith.constant 0 : index
    %3 = vector.load %arg3[%c0_3, %c0_4] : memref<40x128xf32, #tpu.memory_space<vmem>>, vector<40x128xf32>
    %4 = arith.addf %2, %3 : vector<40x128xf32>
    %c0_5 = arith.constant 0 : index
    %c0_6 = arith.constant 0 : index
    %5 = vector.load %arg4[%c0_5, %c0_6] : memref<40x128xf32, #tpu.memory_space<vmem>>, vector<40x128xf32>
    tpu.vector_store %arg4[%c0_5, %c0_6], %4 {strides = array<i32>} : memref<40x128xf32, #tpu.memory_space<vmem>>, vector<40x128xf32>,
    return
  }
  func.func @transform_0(%arg0: i32) -> (i32, i32) {
    %c0_i32 = arith.constant 0 : i32
    %c0_i32_0 = arith.constant 0 : i32
    return %arg0, %c0_i32 : i32, i32
  }
  func.func @transform_1(%arg0: i32) -> (i32, i32) {
    %c0_i32 = arith.constant 0 : i32
    %c0_i32_0 = arith.constant 0 : i32
    %c0_i32_1 = arith.constant 0 : i32
    return %c0_i32, %c0_i32_0 : i32, i32
  }
  func.func @transform_2(%arg0: i32) -> (i32, i32) {
    %c0_i32 = arith.constant 0 : i32
    %c0_i32_0 = arith.constant 0 : i32
    return %arg0, %c0_i32 : i32, i32
  }
  func.func @transform_3(%arg0: i32) -> (i32, i32) {
    %c0_i32 = arith.constant 0 : i32
    %c0_i32_0 = arith.constant 0 : i32
    return %arg0, %c0_i32 : i32, i32
  }
}

</mosaic_0001>

<llo_original>
// kernel: input_embedding.1
$region0: #{input_embedding.1}
  #allocation0 [shape = 'u32[]', space=smem, size = 0x4, offset = 0x4, fixed_abs, tag = 'smem constant byte address 0x4 - core index']
  #allocation1 [shape = 'u32[144,128]{1,0:T(1,128)}', space=vmem, size = 0x12000, scoped, tag = 'internal scratch']
  %s0 = inlined_call_operand.vmem [shape: f32[40,48], index: 0, kind: input, shape index: {}]
  %s1 = inlined_call_operand.vmem [shape: f32[48,128], index: 1, kind: input, shape index: {}]
  %s2 = inlined_call_operand.vmem [shape: f32[40,128], index: 2, kind: input, shape index: {}, may-alias: {2,3}]
  %s3 = inlined_call_operand.vmem [shape: f32[40,128], index: 3, kind: output, shape index: {}, may-alias: {2,3}]
  %s4 = sld [smem:[#allocation0]]
  $region22: #{input_embedding.1} parent=0
    _
  %s6 = ssub.s32 1, %s4
  %s7 = scalar_select 0, %s6, %s4
  // Predicated region
  $region2: #{input_embedding.1} parent=0 // pred_check
    _
  $region3: #{input_embedding.1} parent=0 // pred_check_branch
    %9 = sbr.rel (0) target = $region5
  $region4: #{input_embedding.1} parent=0 // pred_region
    _
  $region5: #{input_embedding.1} parent=0 // pred_fallthru
    _
  // Predicated region
  $region6: #{input_embedding.1} parent=0 // pred_check
    _
  $region7: #{input_embedding.1} parent=0 // pred_check_branch
    %11 = sbr.rel (0) target = $region9
  $region8: #{input_embedding.1} parent=0 // pred_region
    _
  $region9: #{input_embedding.1} parent=0 // pred_fallthru
    _
  // Predicated region
  $region10: #{input_embedding.1} parent=0 // pred_check
    _
  $region11: #{input_embedding.1} parent=0 // pred_check_branch
    %13 = sbr.rel (0) target = $region13
  $region12: #{input_embedding.1} parent=0 // pred_region
    _
  $region13: #{input_embedding.1} parent=0 // pred_fallthru
    _
  %v14 = vld [vmem:[%s0] sm:$0xff]
  %v15 = vld [vmem:[%s0 + $0x8] sm:$0xff]
  %v16 = vld [vmem:[%s0 + $0x10] sm:$0xff]
  %v17 = vld [vmem:[%s0 + $0x18] sm:$0xff]
  %v18 = vld [vmem:[%s0 + $0x20] sm:$0xff]
  %v19 = vld [vmem:[%s1] sm:$0xff]
  %v20 = vld [vmem:[%s1 + $0x8] sm:$0xff]
  %v21 = vld [vmem:[%s1 + $0x10] sm:$0xff]
  %v22 = vld [vmem:[%s1 + $0x18] sm:$0xff]
  %v23 = vld [vmem:[%s1 + $0x20] sm:$0xff]
  %v24 = vld [vmem:[%s1 + $0x28] sm:$0xff]
  %v25 = vld [vmem:[%s2] sm:$0xff]
  %v26 = vld [vmem:[%s2 + $0x8] sm:$0xff]
  %v27 = vld [vmem:[%s2 + $0x10] sm:$0xff]
  %v28 = vld [vmem:[%s2 + $0x18] sm:$0xff]
  %v29 = vld [vmem:[%s2 + $0x20] sm:$0xff]
  %vm30 = vcmask 392192
  %v32 = vsel %vm30, %v14, 0
  %v35 = vsel %vm30, %v15, 0
  %v38 = vsel %vm30, %v16, 0
  %v41 = vsel %vm30, %v17, 0
  %v44 = vsel %vm30, %v18, 0
  %46 = vmatprep.subr.mxu0 0.0
  %47 = vmatpush1.msra.mxu0 0.0
  %48 = vmatprep.subr.mxu0 0.0
  %49 = vmatpush1.msra.mxu0 0.0
  %50 = vmatprep.subr.mxu0 0.0
  %51 = vmatpush1.msra.mxu0 0.0
  %52 = vmatprep.subr.mxu0 0.0
  %53 = vmatpush1.msra.mxu0 0.0
  %54 = vmatprep.subr.mxu0 0.0
  %55 = vmatpush1.msra.mxu0 0.0
  %56 = vmatprep.subr.mxu0 0.0
  %57 = vmatpush1.msra.mxu0 0.0
  %58 = vmatprep.subr.mxu0 0.0
  %59 = vmatpush1.msra.mxu0 0.0
  %60 = vmatprep.subr.mxu0 0.0
  %61 = vmatpush1.msra.mxu0 0.0
  %62 = vmatprep.subr.mxu0 0.0
  %63 = vmatpush1.msra.mxu0 0.0
  %64 = vmatprep.subr.mxu0 0.0
  %65 = vmatpush1.msra.mxu0 0.0
  %66 = vmatprep.subr.mxu0 0.0
  %67 = vmatpush1.msra.mxu0 %v24
  %68 = vmatprep.subr.mxu0 0.0
  %69 = vmatpush1.msra.mxu0 %v23
  %70 = vmatprep.subr.mxu0 0.0
  %71 = vmatpush1.msra.mxu0 %v22
  %72 = vmatprep.subr.mxu0 0.0
  %73 = vmatpush1.msra.mxu0 %v21
  %74 = vmatprep.subr.mxu0 0.0
  %75 = vmatpush1.msra.mxu0 %v20
  %76 = vmatprep.subr.mxu0 0.0
  %77 = vmatpush1.msra.mxu0 %v19
  %78 = vmatprep.subr.mxu0 0.0
  %79 = vmatpush2.msra.mxu0 0.0
  %80 = vmatprep.subr.mxu0 0.0
  %81 = vmatpush2.msra.mxu0 0.0
  %82 = vmatprep.subr.mxu0 0.0
  %83 = vmatpush2.msra.mxu0 0.0
  %84 = vmatprep.subr.mxu0 0.0
  %85 = vmatpush2.msra.mxu0 0.0
  %86 = vmatprep.subr.mxu0 0.0
  %87 = vmatpush2.msra.mxu0 0.0
  %88 = vmatprep.subr.mxu0 0.0
  %89 = vmatpush2.msra.mxu0 0.0
  %90 = vmatprep.subr.mxu0 0.0
  %91 = vmatpush2.msra.mxu0 0.0
  %92 = vmatprep.subr.mxu0 0.0
  %93 = vmatpush2.msra.mxu0 0.0
  %94 = vmatprep.subr.mxu0 0.0
  %95 = vmatpush2.msra.mxu0 0.0
  %96 = vmatprep.subr.mxu0 0.0
  %97 = vmatpush2.msra.mxu0 0.0
  %98 = vmatprep.subr.mxu0 0.0
  %99 = vmatpush2.msra.mxu0 0.0
  %100 = vmatprep.subr.mxu0 0.0
  %101 = vmatpush2.msra.mxu0 0.0
  %102 = vmatprep.subr.mxu0 0.0
  %103 = vmatpush2.msra.mxu0 0.0
  %104 = vmatprep.subr.mxu0 0.0
  %105 = vmatpush2.msra.mxu0 0.0
  %106 = vmatprep.subr.mxu0 0.0
  %107 = vmatpush2.msra.mxu0 0.0
  %108 = vmatprep.subr.mxu0 0.0
  %109 = vmatpush2.msra.mxu0 0.0
  %110 = vmatprep.mubr.f32.mxu0 0.0
  %111 = vmatmul.mubr.f32.gmra.mxu0 %v32
  %v112 = vpop.f32.mrf.mxu0
  %v113 = vadd.f32 %v25, %v112
  %v114 = vpop.f32.mrf.mxu0
  %115 = vmatprep.mubr.f32.mxu0 0.0
  %116 = vmatmul.mubr.f32.gmra.mxu0 %v35
  %v117 = vpop.f32.mrf.mxu0
  %v118 = vadd.f32 %v26, %v117
  %v119 = vpop.f32.mrf.mxu0
  %120 = vmatprep.mubr.f32.mxu0 0.0
  %121 = vmatmul.mubr.f32.gmra.mxu0 %v38
  %v122 = vpop.f32.mrf.mxu0
  %v123 = vadd.f32 %v27, %v122
  %v124 = vpop.f32.mrf.mxu0
  %125 = vmatprep.mubr.f32.mxu0 0.0
  %126 = vmatmul.mubr.f32.gmra.mxu0 %v41
  %v127 = vpop.f32.mrf.mxu0
  %v128 = vadd.f32 %v28, %v127
  %v129 = vpop.f32.mrf.mxu0
  %130 = vmatprep.mubr.f32.mxu0 0.0
  %131 = vmatmul.mubr.f32.gmra.mxu0 %v44
  %v132 = vpop.f32.mrf.mxu0
  %v133 = vadd.f32 %v29, %v132
  %v134 = vpop.f32.mrf.mxu0
  %135 = vdwg.mxu0
  %136 = vst [vmem:[%s3] sm:$0xff] %v113
  %137 = vst [vmem:[%s3 + $0x8] sm:$0xff] %v118
  %138 = vst [vmem:[%s3 + $0x10] sm:$0xff] %v123
  %139 = vst [vmem:[%s3 + $0x18] sm:$0xff] %v128
  %140 = vst [vmem:[%s3 + $0x20] sm:$0xff] %v133
  // Predicated region
  $region14: #{input_embedding.1} parent=0 // pred_check
    _
  $region15: #{input_embedding.1} parent=0 // pred_check_branch
    %142 = sbr.rel (0) target = $region17
  $region16: #{input_embedding.1} parent=0 // pred_region
    _
  $region17: #{input_embedding.1} parent=0 // pred_fallthru
    _
  // Predicated region
  $region18: #{input_embedding.1} parent=0 // pred_check
    _
  $region19: #{input_embedding.1} parent=0 // pred_check_branch
    %144 = sbr.rel (0) target = $region21
  $region20: #{input_embedding.1} parent=0 // pred_region
    _
  $region21: #{input_embedding.1} parent=0 // pred_fallthru
    _

</llo_original>
